<compile_context>
chip_gen: v5e
topology: v5e:2x2
jax: 0.10.0
libtpu: 0.0.40
codegen_flags: <defaults>
</compile_context>

<pallas_src>
import functools

import jax
import jax.numpy as jnp
from jax.experimental import pallas as pl
from jax.experimental.pallas import tpu as pltpu

LANE = 128


def _round_up(x, m):
    return (x + m - 1) // m * m


def _plan_tiles(n):
    """Padded node count Np, row tile TN, reduction (adj-column) tile TK."""
    if n <= 1024:
        tn = 8 if n <= 128 else 128
        np_ = _round_up(n, tn)
        tk = np_                      # single reduction step, full adj row width
    else:
        # bf16 adj tile (256x512) + double buffers + f32 accumulators stay at a few MiB,
        # comfortably inside v7x's 64 MiB VMEM (and v5e/v6e's 128 MiB / default scoped limit).
        tn, tk = 256, 512
        np_ = _round_up(n, 512)       # lcm(256, 512)
    return np_, tn, tk


def _pad2(a, rows, cols):
    return jnp.pad(a, ((0, rows - a.shape[0]), (0, cols - a.shape[1])))


# --------------------------- kernels ---------------------------

def _project_kernel(x_ref, w0_ref, w1_ref, xw0_ref, xw1_ref):
    """xw0 = x @ W0 (f32); xw1 = x @ W1 (bf16, feeds the streamed adj matmul)."""
    x = x_ref[...]
    xw0_ref[...] = jnp.dot(x, w0_ref[...], preferred_element_type=jnp.float32)
    xw1_ref[...] = jnp.dot(
        x, w1_ref[...], preferred_element_type=jnp.float32).astype(xw1_ref.dtype)


def _layer1_kernel(xw0_ref, b_ref, w20_ref, w21_ref, adj_ref, xw1_ref,
                   out0_ref, out1_ref, acc_ref):
    """Accumulate adj @ (x @ W11) over adj-column tiles; at the last step add bias,
    apply relu, and immediately project h1 for layer 2 (h1 never touches HBM)."""
    j = pl.program_id(1)

    @pl.when(j == 0)
    def _():
        acc_ref[...] = jnp.zeros_like(acc_ref)

    acc_ref[...] += jnp.dot(adj_ref[...], xw1_ref[...],
                            preferred_element_type=jnp.float32)

    @pl.when(j == pl.num_programs(1) - 1)
    def _():
        h1 = jnp.maximum(xw0_ref[...] + acc_ref[...] + b_ref[...], 0.0)   # F.relu
        out0_ref[...] = jnp.dot(h1, w20_ref[...],
                                preferred_element_type=jnp.float32)
        out1_ref[...] = jnp.dot(
            h1, w21_ref[...], preferred_element_type=jnp.float32).astype(out1_ref.dtype)


def _layer2_kernel(xw0_ref, b_ref, adj_ref, xw1_ref, out_ref, acc_ref,
                   *, num_classes):
    """Accumulate adj @ (h1 @ W21); at the last step add bias and apply a masked
    softmax over the lane-padded class axis (padded logits -> -1e30)."""
    j = pl.program_id(1)

    @pl.when(j == 0)
    def _():
        acc_ref[...] = jnp.zeros_like(acc_ref)

    acc_ref[...] += jnp.dot(adj_ref[...], xw1_ref[...],
                            preferred_element_type=jnp.float32)

    @pl.when(j == pl.num_programs(1) - 1)
    def _():
        logits = xw0_ref[...] + acc_ref[...] + b_ref[...]
        col = jax.lax.broadcasted_iota(jnp.int32, logits.shape, 1)
        logits = jnp.where(col < num_classes, logits, -1e30)   # mask lane padding
        m = jnp.max(logits, axis=1, keepdims=True)
        e = jnp.exp(logits - m)
        denom = jnp.sum(e, axis=1, keepdims=True)
        out_ref[...] = (e * pl.reciprocal(denom, approx=True)).astype(out_ref.dtype)


# --------------------------- pallas_call wrappers ---------------------------

def _project(x, w0, w1, tn):
    np_, d = x.shape
    hp = w0.shape[1]
    return pl.pallas_call(
        _project_kernel,
        out_shape=(jax.ShapeDtypeStruct((np_, hp), jnp.float32),
                   jax.ShapeDtypeStruct((np_, hp), jnp.bfloat16)),
        grid_spec=pltpu.PrefetchScalarGridSpec(
            num_scalar_prefetch=0,
            grid=(np_ // tn,),
            in_specs=[pl.BlockSpec((tn, d), lambda i: (i, 0)),
                      pl.BlockSpec((d, hp), lambda i: (0, 0)),
                      pl.BlockSpec((d, hp), lambda i: (0, 0))],
            out_specs=[pl.BlockSpec((tn, hp), lambda i: (i, 0)),
                       pl.BlockSpec((tn, hp), lambda i: (i, 0))]),
        compiler_params=pltpu.CompilerParams(dimension_semantics=("parallel",)),
    )(x, w0, w1)


def _layer1(xw0, b1, w20, w21, adj_bf16, xw1, tn, tk):
    np_, hp = xw0.shape
    cp = w20.shape[1]
    return pl.pallas_call(
        _layer1_kernel,
        out_shape=(jax.ShapeDtypeStruct((np_, cp), jnp.float32),
                   jax.ShapeDtypeStruct((np_, cp), jnp.bfloat16)),
        grid_spec=pltpu.PrefetchScalarGridSpec(
            num_scalar_prefetch=0,
            grid=(np_ // tn, np_ // tk),
            in_specs=[pl.BlockSpec((tn, hp), lambda i, j: (i, 0)),    # x @ W10
                      pl.BlockSpec((1, hp), lambda i, j: (0, 0)),     # bias 1
                      pl.BlockSpec((hp, cp), lambda i, j: (0, 0)),    # W20 (padded)
                      pl.BlockSpec((hp, cp), lambda i, j: (0, 0)),    # W21 (padded)
                      pl.BlockSpec((tn, tk), lambda i, j: (i, j)),    # adj block (bf16)
                      pl.BlockSpec((tk, hp), lambda i, j: (j, 0))],   # x @ W11 (bf16)
            out_specs=[pl.BlockSpec((tn, cp), lambda i, j: (i, 0)),
                       pl.BlockSpec((tn, cp), lambda i, j: (i, 0))],
            scratch_shapes=[pltpu.VMEM((tn, hp), jnp.float32)]),
        compiler_params=pltpu.CompilerParams(
            dimension_semantics=("parallel", "arbitrary")),
    )(xw0, b1, w20, w21, adj_bf16, xw1)


def _layer2(xw0, b2, adj_bf16, xw1, tn, tk, num_classes):
    np_, cp = xw0.shape
    return pl.pallas_call(
        functools.partial(_layer2_kernel, num_classes=num_classes),
        out_shape=jax.ShapeDtypeStruct((np_, cp), jnp.float32),
        grid_spec=pltpu.PrefetchScalarGridSpec(
            num_scalar_prefetch=0,
            grid=(np_ // tn, np_ // tk),
            in_specs=[pl.BlockSpec((tn, cp), lambda i, j: (i, 0)),    # h1 @ W20
                      pl.BlockSpec((1, cp), lambda i, j: (0, 0)),     # bias 2
                      pl.BlockSpec((tn, tk), lambda i, j: (i, j)),    # adj block (bf16)
                      pl.BlockSpec((tk, cp), lambda i, j: (j, 0))],   # h1 @ W21 (bf16)
            out_specs=pl.BlockSpec((tn, cp), lambda i, j: (i, 0)),
            scratch_shapes=[pltpu.VMEM((tn, cp), jnp.float32)]),
        compiler_params=pltpu.CompilerParams(
            dimension_semantics=("parallel", "arbitrary")),
    )(xw0, b2, adj_bf16, xw1)


def gcn_net(x, adj, w1, b1, w2, b2):
    """GCNNet forward. x:(N,D), adj:(N,N), w1:(D,H,2), b1:(H,), w2:(H,C,2), b2:(C,)."""
    n, d = x.shape
    h = w1.shape[1]
    c = w2.shape[1]
    np_, tn, tk = _plan_tiles(n)
    hp = _round_up(h, LANE)           # lane-dense hidden width
    cp = _round_up(c, LANE)           # lane-dense class / output width

    xp = _pad2(x.astype(jnp.float32), np_, d)
    adj_bf16 = _pad2(adj.astype(jnp.float32), np_, np_).astype(jnp.bfloat16)
    w10 = _pad2(w1[:, :, 0].astype(jnp.float32), d, hp)
    w11 = _pad2(w1[:, :, 1].astype(jnp.float32), d, hp)
    b1p = _pad2(b1.astype(jnp.float32).reshape(1, -1), 1, hp)
    w20 = _pad2(w2[:, :, 0].astype(jnp.float32), hp, cp)
    w21 = _pad2(w2[:, :, 1].astype(jnp.float32), hp, cp)
    b2p = _pad2(b2.astype(jnp.float32).reshape(1, -1), 1, cp)

    # Phase 0: layer-1 projections x@W10 (f32) and x@W11 (bf16, fed to the adj matmul).
    xw0_1, xw1_1 = _project(xp, w10, w11, tn)
    # Phase 1: stream adj, accumulate adj@(x@W11), bias+relu, then fused layer-2 projection.
    xw0_2, xw1_2 = _layer1(xw0_1, b1p, w20, w21, adj_bf16, xw1_1, tn, tk)
    # Phase 2: stream adj again, accumulate adj@(h1@W21), bias + masked softmax over classes.
    out = _layer2(xw0_2, b2p, adj_bf16, xw1_2, tn, tk, c)
    return out[:n, :c]


def _xavier_normal(key, shape):
    # PyTorch xavier_normal on (in, out, k): fan_in = out*k, fan_out = in*k (dim0/dim1 conv.)
    fan_in = shape[1] * shape[2]
    fan_out = shape[0] * shape[2]
    std = (2.0 / (fan_in + fan_out)) ** 0.5
    return std * jax.random.normal(key, shape, dtype=jnp.float32)


if __name__ == "__main__":
    # Small synthetic graph: N nodes, D input features, hidden1=8, C classes, order_num=1.
    N, D, H, C = 16, 32, 8, 4

    key = jax.random.PRNGKey(0)
    kx, kadj, kw1, kw2, kb1, kb2 = jax.random.split(key, 6)

    x = jax.random.normal(kx, (N, D), dtype=jnp.float32)

    # Symmetric, row-normalized dense adjacency (deterministic).
    a = (jax.random.uniform(kadj, (N, N)) > 0.7).astype(jnp.float32)
    adj = a + a.T + jnp.eye(N, dtype=jnp.float32)
    adj = adj / jnp.sum(adj, axis=1, keepdims=True)

    # Parameters (shapes mirror nn.Parameter(torch.Tensor(in, out, order_num+1))).
    w1 = _xavier_normal(kw1, (D, H, 2))
    b1 = 0.1 * jax.random.normal(kb1, (H,), dtype=jnp.float32)
    w2 = _xavier_normal(kw2, (H, C, 2))
    b2 = 0.1 * jax.random.normal(kb2, (C,), dtype=jnp.float32)

    out = gcn_net(x, adj, w1, b1, w2, b2)
    out = jax.block_until_ready(out)
    assert out.shape == (N, C)

    # Full-precision PyTorch-semantics reference (loose tolerance: kernel uses bf16 adj path).
    h1_ref = jnp.maximum(x @ w1[:, :, 0] + (adj @ x) @ w1[:, :, 1] + b1, 0.0)
    logits_ref = h1_ref @ w2[:, :, 0] + (adj @ h1_ref) @ w2[:, :, 1] + b2
    ref = jax.nn.softmax(logits_ref, axis=1)

    # Quantization-matched reference (bf16 adj / bf16 projected features, reassociated order).
    adj_q = adj.astype(jnp.bfloat16).astype(jnp.float32)
    xw1_q = (x @ w1[:, :, 1]).astype(jnp.bfloat16).astype(jnp.float32)
    h1_q = jnp.maximum(x @ w1[:, :, 0] + adj_q @ xw1_q + b1, 0.0)
    hw1_q = (h1_q @ w2[:, :, 1]).astype(jnp.bfloat16).astype(jnp.float32)
    logits_q = h1_q @ w2[:, :, 0] + adj_q @ hw1_q + b2
    ref_q = jax.nn.softmax(logits_q, axis=1)

    assert jnp.allclose(jnp.sum(out, axis=1), 1.0, atol=5e-3), "softmax rows do not sum to 1"
    assert jnp.allclose(out, ref_q, atol=1e-2), "mismatch vs quantization-matched reference"
    assert jnp.allclose(out, ref, atol=3e-2), "mismatch vs full-precision reference"

    print("KERNEL_OK")
</pallas_src>

<mosaic_0001>
module attributes {stable_mosaic.version = 11 : i64} {
  func.func @_project_kernel(%arg0: i32, %arg1: memref<8x32xf32, #tpu.memory_space<vmem>>, %arg2: memref<32x128xf32, #tpu.memory_space<vmem>>, %arg3: memref<32x128xf32, #tpu.memory_space<vmem>>, %arg4: memref<8x128xf32, #tpu.memory_space<vmem>>, %arg5: memref<8x128xbf16, #tpu.memory_space<vmem>>) attributes {dimension_semantics = [#tpu.dimension_semantics<parallel>], iteration_bounds = array<i64: 2>, scalar_prefetch = 0 : i64, scratch_operands = 0 : i64, tpu.core_type = #tpu.core_type<tc>, window_params = [{transform_indices = @transform_0, window_bounds = array<i64: 8, 32>}, {pipeline_mode = #tpu.pipeline_mode<synchronous>, transform_indices = @transform_1, window_bounds = array<i64: 32, 128>}, {pipeline_mode = #tpu.pipeline_mode<synchronous>, transform_indices = @transform_2, window_bounds = array<i64: 32, 128>}, {transform_indices = @transform_3, window_bounds = array<i64: 8, 128>}, {transform_indices = @transform_4, window_bounds = array<i64: 8, 128>}]} {
    %c0 = arith.constant 0 : index
    %c0_0 = arith.constant 0 : index
    %0 = vector.load %arg1[%c0, %c0_0] : memref<8x32xf32, #tpu.memory_space<vmem>>, vector<8x32xf32>
    %c0_1 = arith.constant 0 : index
    %c0_2 = arith.constant 0 : index
    %1 = vector.load %arg2[%c0_1, %c0_2] : memref<32x128xf32, #tpu.memory_space<vmem>>, vector<32x128xf32>
    %cst = arith.constant dense<0.000000e+00> : vector<8x128xf32>
    %2 = tpu.matmul %0, %1, %cst {dimension_numbers = #tpu.dot_dimension_numbers<[1], [0], [0], [1], [0, 0, 1, 1], [], []>} : vector<8x32xf32>, vector<32x128xf32>, vector<8x128xf32> -> vector<8x128xf32>
    %c0_3 = arith.constant 0 : index
    %c0_4 = arith.constant 0 : index
    %3 = vector.load %arg4[%c0_3, %c0_4] : memref<8x128xf32, #tpu.memory_space<vmem>>, vector<8x128xf32>
    tpu.vector_store %arg4[%c0_3, %c0_4], %2 {strides = array<i32>} : memref<8x128xf32, #tpu.memory_space<vmem>>, vector<8x128xf32>,
    %c0_5 = arith.constant 0 : index
    %c0_6 = arith.constant 0 : index
    %4 = vector.load %arg3[%c0_5, %c0_6] : memref<32x128xf32, #tpu.memory_space<vmem>>, vector<32x128xf32>
    %cst_7 = arith.constant dense<0.000000e+00> : vector<8x128xf32>
    %5 = tpu.matmul %0, %4, %cst_7 {dimension_numbers = #tpu.dot_dimension_numbers<[1], [0], [0], [1], [0, 0, 1, 1], [], []>} : vector<8x32xf32>, vector<32x128xf32>, vector<8x128xf32> -> vector<8x128xf32>
    %6 = arith.truncf %5 : vector<8x128xf32> to vector<8x128xbf16>
    %c0_8 = arith.constant 0 : index
    %c0_9 = arith.constant 0 : index
    %7 = vector.load %arg5[%c0_8, %c0_9] : memref<8x128xbf16, #tpu.memory_space<vmem>>, vector<8x128xbf16>
    tpu.vector_store %arg5[%c0_8, %c0_9], %6 {strides = array<i32>} : memref<8x128xbf16, #tpu.memory_space<vmem>>, vector<8x128xbf16>,
    return
  }
  func.func @transform_0(%arg0: i32) -> (i32, i32) {
    %c0_i32 = arith.constant 0 : i32
    %c0_i32_0 = arith.constant 0 : i32
    return %arg0, %c0_i32 : i32, i32
  }
  func.func @transform_1(%arg0: i32) -> (i32, i32) {
    %c0_i32 = arith.constant 0 : i32
    %c0_i32_0 = arith.constant 0 : i32
    %c0_i32_1 = arith.constant 0 : i32
    return %c0_i32, %c0_i32_0 : i32, i32
  }
  func.func @transform_2(%arg0: i32) -> (i32, i32) {
    %c0_i32 = arith.constant 0 : i32
    %c0_i32_0 = arith.constant 0 : i32
    %c0_i32_1 = arith.constant 0 : i32
    return %c0_i32, %c0_i32_0 : i32, i32
  }
  func.func @transform_3(%arg0: i32) -> (i32, i32) {
    %c0_i32 = arith.constant 0 : i32
    %c0_i32_0 = arith.constant 0 : i32
    return %arg0, %c0_i32 : i32, i32
  }
  func.func @transform_4(%arg0: i32) -> (i32, i32) {
    %c0_i32 = arith.constant 0 : i32
    %c0_i32_0 = arith.constant 0 : i32
    return %arg0, %c0_i32 : i32, i32
  }
}

</mosaic_0001>

<llo_original>
// kernel: tpu_custom_call.1
$region0: #{tpu_custom_call.1}
  #allocation0 [shape = 'u32[]', space=smem, size = 0x4, offset = 0x4, fixed_abs, tag = 'smem constant byte address 0x4 - core index']
  #allocation1 [shape = 'u32[72,128]{1,0:T(1,128)}', space=vmem, size = 0x9000, scoped, tag = 'internal scratch']
  %s0 = inlined_call_operand.hbm [shape: f32[16,32], index: 0, kind: input, shape index: {}]
  %s1 = inlined_call_operand.hbm [shape: f32[32,128], index: 1, kind: input, shape index: {}]
  %s2 = inlined_call_operand.hbm [shape: f32[32,128], index: 2, kind: input, shape index: {}]
  %s3 = inlined_call_operand.hbm [shape: f32[16,128], index: 3, kind: output, shape index: {0}]
  %s4 = inlined_call_operand.hbm [shape: bf16[16,128], index: 4, kind: output, shape index: {1}]
  %5 = xla_tuple %s3, %s4
  %s6 = sld [smem:[#allocation0]]
  $region65: #{tpu_custom_call.1} parent=0
    _
  %s8 = ssub.s32 1, %s6
  %s9 = scalar_select 0, %s8, %s6
  $region1: #{tpu_custom_call.1} parent=0
    #allocation2 [shape = 'u8[8192]{0}', space=vmem, size = 0x2000, scoped, tag = 'input window, operand 0']
    #allocation3 [shape = 's32[2]{0}', space=sflag, size = 0x8, scoped, tag = 'scoped memory for tpu_custom_call.1']
    #allocation4 [shape = 's32[2]{0}', space=sflag, size = 0x8, scoped, tag = 'scoped memory for tpu_custom_call.1']
    #allocation5 [shape = 'u8[16384]{0}', space=vmem, size = 0x4000, scoped, tag = 'input window, operand 1, single buffered']
    #allocation6 [shape = 's32[1]{0}', space=sflag, size = 0x4, scoped, tag = 'scoped memory for tpu_custom_call.1']
    #allocation7 [shape = 'u8[16384]{0}', space=vmem, size = 0x4000, scoped, tag = 'input window, operand 2, single buffered']
    #allocation8 [shape = 'u8[8192]{0}', space=vmem, size = 0x2000, scoped, tag = 'output window, operand 0']
    #allocation9 [shape = 'u8[4096]{0}', space=vmem, size = 0x1000, scoped, tag = 'output window, operand 1']
    #allocation10 [shape = 's32[2]{0}', space=sflag, size = 0x8, scoped, tag = 'scoped memory for tpu_custom_call.1']
    %10 = vsyncpa [#allocation3], 0
    %s11 = scalar_lea.sflag [#allocation3], 1
    %12 = vsyncpa %s11, 0
    %13 = vsyncpa [#allocation6], 0
    %14 = vsyncpa [#allocation4], 0
    %s15 = scalar_lea.sflag [#allocation4], 1
    %16 = vsyncpa %s15, 0
    %17 = vsyncpa [#allocation10], 0
    %s18 = scalar_lea.sflag [#allocation10], 1
    %19 = vsyncpa %s18, 0
    loop: start=0, step=1, limit=4
    $region2: #{tpu_custom_call.1} parent=1 // loop_pre_header
      _
    $region3: #{tpu_custom_call.1} parent=1 // loop_header
      %s21 = sphi 0, %s25
      %p22 = scmp.ge.s32.totalorder %s21, 4
      %s31 = sphi 0, %s33
      %s34 = sphi 0, %s31
      %s35 = sphi 0, %s34
      %s51 = sphi 0, %s35
      %s55 = sphi 0, %s55
      %s57 = sphi 0, %s55
      %s58 = sphi 0, %s57
      %s72 = sphi 0, %s58
      %s76 = sphi 0, %s76
      %s78 = sphi 0, %s76
      %s79 = sphi 0, %s78
      %s93 = sphi 0, %s79
      %s99 = sphi 0, %s101
      %s102 = sphi 0, %s99
      %s103 = sphi 0, %s102
      %s119 = sphi 0, %s103
      %s125 = sphi 0, %s127
      %s128 = sphi 0, %s125
      %s129 = sphi 0, %s128
      %s145 = sphi 0, %s129
    $region4: #{tpu_custom_call.1} parent=1 // loop_header_branch
      %24 = sbr.rel (%p22) target = $region8
    $region5: #{tpu_custom_call.1} parent=1 // loop_body
      %s26 = ssub.s32 %s21, 1
      %s27 = ssub.s32 %s21, 2
      %s28 = sadd.s32 %s21, 1
      %s29 = ssub.s32 %s21, %s28
      %p30 = scmp.eq.s32.totalorder %s29, 0
      %s32 = sadd.s32 %s31, 1
      %s33 = scalar_select %p30, %s31, %s32
      %p36 = pneg %p30
      %p37 = scmp.eq.s32.totalorder %s21, 1
      %p38 = por %p36, %p37
      %p39 = scmp.ne.s32.totalorder %s31, %s34
      %p40 = scmp.eq.s32.totalorder %s21, 0
      %p41 = por %p39, %p40
      %p42 = scmp.ne.s32.totalorder %s31, %s34
      %p43 = scmp.eq.s32.totalorder %s26, 1
      %p44 = por %p42, %p43
      %p45 = scmp.ne.s32.totalorder %s34, %s35
      %p46 = scmp.eq.s32.totalorder %s26, 0
      %p47 = por %p45, %p46
      %p48 = scmp.ne.s32.totalorder %s34, %s35
      %p49 = scmp.eq.s32.totalorder %s27, 1
      %p50 = por %p48, %p49
      %p52 = scmp.ne.s32.totalorder %s35, %s51
      %p53 = scmp.eq.s32.totalorder %s27, 0
      %p54 = por %p52, %p53
      %s56 = sadd.s32 %s55, 1
      %p59 = scmp.eq.s32.totalorder %s21, 1
      %p60 = scmp.ne.s32.totalorder %s55, %s57
      %p61 = scmp.eq.s32.totalorder %s21, 0
      %p62 = por %p60, %p61
      %p63 = scmp.ne.s32.totalorder %s55, %s57
      %p64 = scmp.eq.s32.totalorder %s26, 1
      %p65 = por %p63, %p64
      %p66 = scmp.ne.s32.totalorder %s57, %s58
      %p67 = scmp.eq.s32.totalorder %s26, 0
      %p68 = por %p66, %p67
      %p69 = scmp.ne.s32.totalorder %s57, %s58
      %p70 = scmp.eq.s32.totalorder %s27, 1
      %p71 = por %p69, %p70
      %p73 = scmp.ne.s32.totalorder %s58, %s72
      %p74 = scmp.eq.s32.totalorder %s27, 0
      %p75 = por %p73, %p74
      %s77 = sadd.s32 %s76, 1
      %p80 = scmp.eq.s32.totalorder %s21, 1
      %p81 = scmp.ne.s32.totalorder %s76, %s78
      %p82 = scmp.eq.s32.totalorder %s21, 0
      %p83 = por %p81, %p82
      %p84 = scmp.ne.s32.totalorder %s76, %s78
      %p85 = scmp.eq.s32.totalorder %s26, 1
      %p86 = por %p84, %p85
      %p87 = scmp.ne.s32.totalorder %s78, %s79
      %p88 = scmp.eq.s32.totalorder %s26, 0
      %p89 = por %p87, %p88
      %p90 = scmp.ne.s32.totalorder %s78, %s79
      %p91 = scmp.eq.s32.totalorder %s27, 1
      %p92 = por %p90, %p91
      %p94 = scmp.ne.s32.totalorder %s79, %s93
      %p95 = scmp.eq.s32.totalorder %s27, 0
      %p96 = por %p94, %p95
      %s97 = ssub.s32 %s21, %s28
      %p98 = scmp.eq.s32.totalorder %s97, 0
      %s100 = sadd.s32 %s99, 1
      %s101 = scalar_select %p98, %s99, %s100
      %p104 = pneg %p98
      %p105 = scmp.eq.s32.totalorder %s21, 1
      %p106 = por %p104, %p105
      %p107 = scmp.ne.s32.totalorder %s99, %s102
      %p108 = scmp.eq.s32.totalorder %s21, 0
      %p109 = por %p107, %p108
      %p110 = scmp.ne.s32.totalorder %s99, %s102
      %p111 = scmp.eq.s32.totalorder %s26, 1
      %p112 = por %p110, %p111
      %p113 = scmp.ne.s32.totalorder %s102, %s103
      %p114 = scmp.eq.s32.totalorder %s26, 0
      %p115 = por %p113, %p114
      %p116 = scmp.ne.s32.totalorder %s102, %s103
      %p117 = scmp.eq.s32.totalorder %s27, 1
      %p118 = por %p116, %p117
      %p120 = scmp.ne.s32.totalorder %s103, %s119
      %p121 = scmp.eq.s32.totalorder %s27, 0
      %p122 = por %p120, %p121
      %s123 = ssub.s32 %s21, %s28
      %p124 = scmp.eq.s32.totalorder %s123, 0
      %s126 = sadd.s32 %s125, 1
      %s127 = scalar_select %p124, %s125, %s126
      %p130 = pneg %p124
      %p131 = scmp.eq.s32.totalorder %s21, 1
      %p132 = por %p130, %p131
      %p133 = scmp.ne.s32.totalorder %s125, %s128
      %p134 = scmp.eq.s32.totalorder %s21, 0
      %p135 = por %p133, %p134
      %p136 = scmp.ne.s32.totalorder %s125, %s128
      %p137 = scmp.eq.s32.totalorder %s26, 1
      %p138 = por %p136, %p137
      %p139 = scmp.ne.s32.totalorder %s128, %s129
      %p140 = scmp.eq.s32.totalorder %s26, 0
      %p141 = por %p139, %p140
      %p142 = scmp.ne.s32.totalorder %s128, %s129
      %p143 = scmp.eq.s32.totalorder %s27, 1
      %p144 = por %p142, %p143
      %p146 = scmp.ne.s32.totalorder %s129, %s145
      %p147 = scmp.eq.s32.totalorder %s27, 0
      %p148 = por %p146, %p147
      %p149 = scmp.le.s32.totalorder 1, %s21
      %p150 = scmp.lt.s32.totalorder %s21, 3
      %p151 = pnand %p149, %p150
      %p152 = pneg %p151
      // Predicated region
      $region9: #{tpu_custom_call.1} parent=5 // pred_check
        _
      $region10: #{tpu_custom_call.1} parent=5 // pred_check_branch
        %154 = sbr.rel (%p151) target = $region12
      $region11: #{tpu_custom_call.1} parent=5 // pred_region
        %s155 = ssub.s32 %s21, 1
        // Predicated region
        $region13: #{tpu_custom_call.1} parent=11 // pred_check
          %p156 = pneg %p68
        $region14: #{tpu_custom_call.1} parent=11 // pred_check_branch
          %158 = sbr.rel (%p156) target = $region16
        $region15: #{tpu_custom_call.1} parent=11 // pred_region
          %160 = vsyncadd [#allocation6], 0
          %s161 = sshll.u32 %s1, 4
          %s162 = int_to_ptr.hbm [resolvable:$true] %s161
          %s163 = sshll.u32 [#allocation5], 4
          %s164 = int_to_ptr.vmem [resolvable:$true] %s163
          %169 = dma.hbm_to_vmem [thread:$0]  %s162, 512, %s164, [#allocation6], 128, 128, 8
        $region16: #{tpu_custom_call.1} parent=11 // pred_fallthru
          _
        // Predicated region
        $region17: #{tpu_custom_call.1} parent=11 // pred_check
          %p170 = pneg %p89
        $region18: #{tpu_custom_call.1} parent=11 // pred_check_branch
          %172 = sbr.rel (%p170) target = $region20
        $region19: #{tpu_custom_call.1} parent=11 // pred_region
          %174 = vsyncadd [#allocation6], 0
          %s175 = sshll.u32 %s2, 4
          %s176 = int_to_ptr.hbm [resolvable:$true] %s175
          %s177 = sshll.u32 [#allocation7], 4
          %s178 = int_to_ptr.vmem [resolvable:$true] %s177
          %183 = dma.hbm_to_vmem [thread:$0]  %s176, 512, %s178, [#allocation6], 128, 128, 8
        $region20: #{tpu_custom_call.1} parent=11 // pred_fallthru
          _
      $region12: #{tpu_custom_call.1} parent=5 // pred_fallthru
        _
      %p184 = scmp.lt.s32.totalorder %s21, 2
      // Predicated region
      $region21: #{tpu_custom_call.1} parent=5 // pred_check
        %p185 = pneg %p184
      $region22: #{tpu_custom_call.1} parent=5 // pred_check_branch
        %187 = sbr.rel (%p185) target = $region24
      $region23: #{tpu_custom_call.1} parent=5 // pred_region
        // Predicated region
        $region25: #{tpu_custom_call.1} parent=23 // pred_check
          %p188 = pneg %p41
        $region26: #{tpu_custom_call.1} parent=23 // pred_check_branch
          %190 = sbr.rel (%p188) target = $region28
        $region27: #{tpu_custom_call.1} parent=23 // pred_region
          %s191 = sand.u32 %s31, 1
          %s192 = scalar_lea.sflag [#allocation3], %s191
          %s193 = sand.u32 %s31, 1
          %s194 = smul.addr %s193, 8
          %s195 = scalar_lea.vmem [#allocation2], %s194
          %197 = vsyncadd %s192, 0
          %s198 = smul.addr %s21, 8
          %s199 = scalar_lea.hbm %s0, %s198
          %s201 = sshll.u32 %s199, 4
          %s202 = int_to_ptr.hbm [resolvable:$true] %s201
          %s203 = sshll.u32 %s195, 4
          %s204 = int_to_ptr.vmem [resolvable:$true] %s203
          %206 = dma.hbm_to_vmem [thread:$0]  %s202, 128, %s204, %s192
        $region28: #{tpu_custom_call.1} parent=23 // pred_fallthru
          _
      $region24: #{tpu_custom_call.1} parent=5 // pred_fallthru
        _
      %p207 = scmp.le.s32.totalorder 1, %s21
      %p208 = scmp.lt.s32.totalorder %s21, 3
      %p209 = pnand %p207, %p208
      %p210 = pneg %p209
      // Predicated region
      $region29: #{tpu_custom_call.1} parent=5 // pred_check
        _
      $region30: #{tpu_custom_call.1} parent=5 // pred_check_branch
        %212 = sbr.rel (%p209) target = $region32
      $region31: #{tpu_custom_call.1} parent=5 // pred_region
        %s213 = ssub.s32 %s21, 1
        %s214 = sand.u32 %s34, 1
        %s215 = scalar_lea.sflag [#allocation3], %s214
        %s216 = sand.u32 %s34, 1
        %s217 = smul.addr %s216, 8
        %s218 = scalar_lea.vmem [#allocation2], %s217
        // Predicated region
        $region33: #{tpu_custom_call.1} parent=31 // pred_check
          %p219 = pneg %p47
        $region34: #{tpu_custom_call.1} parent=31 // pred_check_branch
          %221 = sbr.rel (%p219) target = $region36
        $region35: #{tpu_custom_call.1} parent=31 // pred_region
          %223 = dma.done %s215, 128
        $region36: #{tpu_custom_call.1} parent=31 // pred_fallthru
          _
        // Predicated region
        $region37: #{tpu_custom_call.1} parent=31 // pred_check
          %p224 = pneg %p68
        $region38: #{tpu_custom_call.1} parent=31 // pred_check_branch
          %226 = sbr.rel (%p224) target = $region40
        $region39: #{tpu_custom_call.1} parent=31 // pred_region
          %228 = dma.done [#allocation6], 512
        $region40: #{tpu_custom_call.1} parent=31 // pred_fallthru
          _
        // Predicated region
        $region41: #{tpu_custom_call.1} parent=31 // pred_check
          %p229 = pneg %p89
        $region42: #{tpu_custom_call.1} parent=31 // pred_check_branch
          %231 = sbr.rel (%p229) target = $region44
        $region43: #{tpu_custom_call.1} parent=31 // pred_region
          %233 = dma.done [#allocation6], 512
        $region44: #{tpu_custom_call.1} parent=31 // pred_fallthru
          _
        %s234 = sand.u32 %s34, 1
        %s235 = scalar_lea.sflag [#allocation3], %s234
        %s236 = sand.u32 %s34, 1
        %s237 = smul.addr %s236, 8
        %s238 = scalar_lea.vmem [#allocation2], %s237
        %p239 = pneg %p47
        %p240 = pneg %p44
        %p241 = pneg %p68
        %p242 = pneg %p65
        %p243 = pneg %p89
        %p244 = pneg %p86
        %p245 = pneg %p115
        %p246 = pneg %p112
        %s247 = sand.u32 %s102, 1
        %s248 = scalar_lea.sflag [#allocation4], %s247
        %s249 = sand.u32 %s102, 1
        %s250 = smul.addr %s249, 8
        %s251 = scalar_lea.vmem [#allocation8], %s250
        %p252 = pneg %p141
        %p253 = pneg %p138
        %s254 = sand.u32 %s128, 1
        %s255 = scalar_lea.sflag [#allocation10], %s254
        %s256 = sand.u32 %s128, 1
        %s257 = smul.addr %s256, 4
        %s258 = scalar_lea.vmem [#allocation9], %s257
        %v259 = vld [vmem:[%s218] sm:$0xff]
        %v260 = vld [vmem:[#allocation5] sm:$0xff]
        %v261 = vld [vmem:[#allocation5 + $0x8] sm:$0xff]
        %v262 = vld [vmem:[#allocation5 + $0x10] sm:$0xff]
        %v263 = vld [vmem:[#allocation5 + $0x18] sm:$0xff]
        %vm264 = vcmask 261120
        %v266 = vsel %vm264, %v259, 0
        %268 = vmatpush.msra.mxu0 0.0
        %269 = vmatpush.msra.mxu0 0.0
        %270 = vmatpush.msra.mxu0 0.0
        %271 = vmatpush.msra.mxu0 0.0
        %272 = vmatpush.msra.mxu0 0.0
        %273 = vmatpush.msra.mxu0 0.0
        %274 = vmatpush.msra.mxu0 0.0
        %275 = vmatpush.msra.mxu0 0.0
        %276 = vmatpush.msra.mxu0 0.0
        %277 = vmatpush.msra.mxu0 0.0
        %278 = vmatpush.msra.mxu0 0.0
        %279 = vmatpush.msra.mxu0 0.0
        %280 = vmatpush.msra.mxu0 %v263
        %281 = vmatpush.msra.mxu0 %v262
        %282 = vmatpush.msra.mxu0 %v261
        %283 = vmatpush.msra.mxu0 %v260
        %284 = vmatmul.f32.gmra.mxu0 %v266
        %v285 = vpop.f32.mrf.mxu0
        %v286 = vadd.f32 0.0, %v285
        %287 = vdwg.mxu0
        %288 = vst [vmem:[%s251] sm:$0xff] %v286
        %v289 = vld [vmem:[#allocation7] sm:$0xff]
        %v290 = vld [vmem:[#allocation7 + $0x8] sm:$0xff]
        %v291 = vld [vmem:[#allocation7 + $0x10] sm:$0xff]
        %v292 = vld [vmem:[#allocation7 + $0x18] sm:$0xff]
        %293 = vmatpush.msra.mxu0 0.0
        %294 = vmatpush.msra.mxu0 0.0
        %295 = vmatpush.msra.mxu0 0.0
        %296 = vmatpush.msra.mxu0 0.0
        %297 = vmatpush.msra.mxu0 0.0
        %298 = vmatpush.msra.mxu0 0.0
        %299 = vmatpush.msra.mxu0 0.0
        %300 = vmatpush.msra.mxu0 0.0
        %301 = vmatpush.msra.mxu0 0.0
        %302 = vmatpush.msra.mxu0 0.0
        %303 = vmatpush.msra.mxu0 0.0
        %304 = vmatpush.msra.mxu0 0.0
        %305 = vmatpush.msra.mxu0 %v292
        %306 = vmatpush.msra.mxu0 %v291
        %307 = vmatpush.msra.mxu0 %v290
        %308 = vmatpush.msra.mxu0 %v289
        %309 = vmatmul.f32.gmra.mxu0 %v266
        %v310 = vpop.f32.mrf.mxu0
        %v311 = vadd.f32 0.0, %v310
        %312 = vdwg.mxu0
        %v313 = vpack.c.bf16 %v311, %v311
        %314 = vst [vmem:[%s258] sm:$0xf] %v313
        %s315 = sand.u32 %s102, 1
        %s316 = scalar_lea.sflag [#allocation4], %s315
        %s317 = sand.u32 %s102, 1
        %s318 = smul.addr %s317, 8
        %s319 = scalar_lea.vmem [#allocation8], %s318
        %s320 = sand.u32 %s128, 1
        %s321 = scalar_lea.sflag [#allocation10], %s320
        %s322 = sand.u32 %s128, 1
        %s323 = smul.addr %s322, 4
        %s324 = scalar_lea.vmem [#allocation9], %s323
        // Predicated region
        $region45: #{tpu_custom_call.1} parent=31 // pred_check
          %p325 = pneg %p112
        $region46: #{tpu_custom_call.1} parent=31 // pred_check_branch
          %327 = sbr.rel (%p325) target = $region48
        $region47: #{tpu_custom_call.1} parent=31 // pred_region
          %329 = vsyncadd %s316, 0
          %s330 = smul.addr %s26, 8
          %s331 = scalar_lea.hbm %s3, %s330
          %s333 = sshll.u32 %s319, 4
          %s334 = int_to_ptr.vmem [resolvable:$true] %s333
          %s335 = sshll.u32 %s331, 4
          %s336 = int_to_ptr.hbm [resolvable:$true] %s335
          %338 = dma.vmem_to_hbm [thread:$0]  %s334, 128, %s336, %s316
        $region48: #{tpu_custom_call.1} parent=31 // pred_fallthru
          _
        // Predicated region
        $region49: #{tpu_custom_call.1} parent=31 // pred_check
          %p339 = pneg %p138
        $region50: #{tpu_custom_call.1} parent=31 // pred_check_branch
          %341 = sbr.rel (%p339) target = $region52
        $region51: #{tpu_custom_call.1} parent=31 // pred_region
          %343 = vsyncadd %s321, 0
          %s344 = smul.addr %s26, 4
          %s345 = scalar_lea.hbm %s4, %s344
          %s347 = sshll.u32 %s324, 4
          %s348 = int_to_ptr.vmem [resolvable:$true] %s347
          %s349 = sshll.u32 %s345, 4
          %s350 = int_to_ptr.hbm [resolvable:$true] %s349
          %352 = dma.vmem_to_hbm [thread:$0]  %s348, 64, %s350, %s321
        $region52: #{tpu_custom_call.1} parent=31 // pred_fallthru
          _
      $region32: #{tpu_custom_call.1} parent=5 // pred_fallthru
        _
      %p353 = scmp.le.s32.totalorder 2, %s21
      // Predicated region
      $region53: #{tpu_custom_call.1} parent=5 // pred_check
        %p354 = pneg %p353
      $region54: #{tpu_custom_call.1} parent=5 // pred_check_branch
        %356 = sbr.rel (%p354) target = $region56
      $region55: #{tpu_custom_call.1} parent=5 // pred_region
        %s357 = ssub.s32 %s21, 2
        // Predicated region
        $region57: #{tpu_custom_call.1} parent=55 // pred_check
          %p358 = pneg %p118
        $region58: #{tpu_custom_call.1} parent=55 // pred_check_branch
          %360 = sbr.rel (%p358) target = $region60
        $region59: #{tpu_custom_call.1} parent=55 // pred_region
          %s361 = sand.u32 %s103, 1
          %s362 = scalar_lea.sflag [#allocation4], %s361
          %s363 = sand.u32 %s103, 1
          %s364 = smul.addr %s363, 8
          %s365 = scalar_lea.vmem [#allocation8], %s364
          %367 = dma.done %s362, 128
        $region60: #{tpu_custom_call.1} parent=55 // pred_fallthru
          _
        // Predicated region
        $region61: #{tpu_custom_call.1} parent=55 // pred_check
          %p368 = pneg %p144
        $region62: #{tpu_custom_call.1} parent=55 // pred_check_branch
          %370 = sbr.rel (%p368) target = $region64
        $region63: #{tpu_custom_call.1} parent=55 // pred_region
          %s371 = sand.u32 %s129, 1
          %s372 = scalar_lea.sflag [#allocation10], %s371
          %s373 = sand.u32 %s129, 1
          %s374 = smul.addr %s373, 4
          %s375 = scalar_lea.vmem [#allocation9], %s374
          %377 = dma.done %s372, 64
        $region64: #{tpu_custom_call.1} parent=55 // pred_fallthru
          _
      $region56: #{tpu_custom_call.1} parent=5 // pred_fallthru
        _
    $region6: #{tpu_custom_call.1} parent=1 // loop_footer
      %s25 = sadd.s32 1, %s21
    $region7: #{tpu_custom_call.1} parent=1 // loop_footer_branch
      %20 = sbr.rel target = $region3
    $region8: #{tpu_custom_call.1} parent=1 // loop_exit
      _
    %378 = vsyncpa [#allocation3], 1
    %s379 = scalar_lea.sflag [#allocation3], 1
    %380 = vsyncpa %s379, 1
    %381 = vsyncpa [#allocation6], 1
    %382 = vsyncpa [#allocation4], 1
    %s383 = scalar_lea.sflag [#allocation4], 1
    %384 = vsyncpa %s383, 1
    %385 = vsyncpa [#allocation10], 1
    %s386 = scalar_lea.sflag [#allocation10], 1
    %387 = vsyncpa %s386, 1

</llo_original>
